<compile_context>
chip_gen: v7x
topology: tpu7x:2x2x1
jax: 0.10.0
libtpu: 0.0.40
codegen_flags: <defaults>
</compile_context>

<pallas_src>
import functools

import jax
import jax.numpy as jnp
from jax.experimental import pallas as pl
from jax.experimental.pallas import tpu as pltpu

# "Minus infinity" stand-in: exp(_FLOOR - finite) underflows to exactly 0 and it
# never produces inf - inf = nan in the running-max rescales.
_FLOOR = -1e30


def _cdiv(a, b):
    return -(-a // b)


def _round_up(x, m):
    return _cdiv(x, m) * m


def _sublane_multiple(dtype):
    # Minimum second-to-last tile dim by element width: f32->8, bf16->16, 8-bit->32.
    return {4: 8, 2: 16, 1: 32}[jnp.dtype(dtype).itemsize]


def _pick_tile(dim, want, align):
    """Largest tile <= want that is a multiple of `align` (or the full dim if dim <= align)."""
    if dim <= align:
        return dim
    want = max(align, (want // align) * align)
    return min(want, (dim // align) * align)


def _contrastive_head_kernel(inv_t_ref, pos_ref, neg_ref, loss_ref, m_ref, s_ref,
                             *, k_total, tk, lane_width, mask_tail):
    kj = pl.program_id(1)
    inv_t = inv_t_ref[0]

    @pl.when(kj == 0)
    def _():
        m_ref[...] = jnp.full_like(m_ref, _FLOOR)
        s_ref[...] = jnp.zeros_like(s_ref)

    # Scale this tile of negatives; mask the ragged K tail in-kernel so the
    # wrapper never has to materialize a padded copy of the memory bank in HBM.
    neg = neg_ref[...].astype(jnp.float32) * inv_t                       # (tn, tk)
    if mask_tail:
        col = jax.lax.broadcasted_iota(jnp.int32, neg.shape, 1) + kj * tk
        neg = jnp.where(col < k_total, neg, _FLOOR)

    # Per-lane-position online logsumexp: steady-state work is VPU elementwise
    # max/exp/add across the tk/128 lane groups, one exp per element (EUP), and
    # zero cross-lane XLU traffic.
    n_groups = tk // lane_width
    m_prev = m_ref[...]                                                  # (tn, lw)
    m_new = m_prev
    for g in range(n_groups):
        m_new = jnp.maximum(m_new, neg[:, g * lane_width:(g + 1) * lane_width])
    s_new = s_ref[...] * jnp.exp(m_prev - m_new)
    for g in range(n_groups):
        s_new = s_new + jnp.exp(neg[:, g * lane_width:(g + 1) * lane_width] - m_new)
    m_ref[...] = m_new
    s_ref[...] = s_new

    @pl.when(kj == pl.num_programs(1) - 1)
    def _():
        # One cross-lane reduce per row tile, then fold in the positive
        # (class-0) logit and emit per-row cross-entropy: lse([pos, neg]) - pos.
        pos = pos_ref[...].astype(jnp.float32) * inv_t                   # (tn, 1)
        m_lane = m_ref[...]
        s_lane = s_ref[...]
        m_row = jnp.max(m_lane, axis=1, keepdims=True)                   # (tn, 1)
        s_row = jnp.sum(s_lane * jnp.exp(m_lane - m_row), axis=1, keepdims=True)
        m_fin = jnp.maximum(m_row, pos)
        s_fin = s_row * jnp.exp(m_row - m_fin) + jnp.exp(pos - m_fin)
        loss_ref[...] = m_fin + jnp.log(s_fin) - pos


@functools.partial(jax.jit, static_argnames=("row_tile", "k_tile"))
def contrastive_head_loss(pos, neg, temperature=0.1, *, row_tile=256, k_tile=4096):
    """Returns {'loss': scalar} matching ContrastiveHead.forward(pos, neg)."""
    N, one = pos.shape
    assert one == 1, "pos must be (N, 1)"
    assert neg.ndim == 2 and neg.shape[0] == N, "neg must be (N, K)"
    K = neg.shape[1]

    sub = max(_sublane_multiple(pos.dtype), _sublane_multiple(neg.dtype))
    tn = _pick_tile(N, row_tile, sub)
    tk = _pick_tile(K, k_tile, 128)

    # v7x megacore: make sure the "parallel" row axis has >= 2 tiles whenever the
    # row count allows it, so both TensorCores get work (no effect on v5e/v6e).
    if _cdiv(N, tn) < 2 and N > sub:
        tn = _pick_tile(N, _round_up(_cdiv(N, 2), sub), sub)

    num_row_tiles = _cdiv(N, tn)
    num_k_tiles = _cdiv(K, tk)
    mask_tail = (K % tk) != 0
    lane_width = 128 if tk % 128 == 0 else tk   # tk < 128 only when tk == K

    inv_t = (1.0 / jnp.asarray(temperature, jnp.float32)).reshape(1)

    kernel = functools.partial(_contrastive_head_kernel, k_total=K, tk=tk,
                               lane_width=lane_width, mask_tail=mask_tail)

    per_row = pl.pallas_call(
        kernel,
        out_shape=jax.ShapeDtypeStruct((num_row_tiles * tn, 1), jnp.float32),
        grid_spec=pltpu.PrefetchScalarGridSpec(
            num_scalar_prefetch=0,
            grid=(num_row_tiles, num_k_tiles),
            in_specs=[
                pl.BlockSpec(memory_space=pltpu.MemorySpace.SMEM),      # 1/temperature
                pl.BlockSpec((tn, 1), lambda i, k: (i, 0)),             # pos (resident)
                pl.BlockSpec((tn, tk), lambda i, k: (i, k)),            # neg (streamed)
            ],
            out_specs=pl.BlockSpec((tn, 1), lambda i, k: (i, 0)),
            scratch_shapes=[
                pltpu.VMEM((tn, lane_width), jnp.float32),              # per-lane running max
                pltpu.VMEM((tn, lane_width), jnp.float32),              # per-lane running sumexp
            ],
        ),
        compiler_params=pltpu.CompilerParams(
            dimension_semantics=("parallel", "arbitrary"),
            vmem_limit_bytes=48 * 1024 * 1024,
        ),
    )(inv_t, pos, neg)

    # Padded row tiles (ragged N) are sliced off here; mean matches CrossEntropyLoss.
    loss = jnp.mean(per_row[:N, 0])
    return {"loss": loss}


def _reference_loss(pos, neg, temperature):
    logits = jnp.concatenate([pos, neg], axis=1).astype(jnp.float32) / temperature
    return -jnp.mean(jax.nn.log_softmax(logits, axis=-1)[:, 0])


if __name__ == "__main__":
    key = jax.random.PRNGKey(0)
    kp1, kn1, kp2, kn2, kp4, kn4 = jax.random.split(key, 6)

    # 1) f32, small tiles: multi row-tile grid, streaming K carry, ragged K tail mask.
    pos1 = jax.random.normal(kp1, (24, 1), jnp.float32)
    neg1 = jax.random.normal(kn1, (24, 200), jnp.float32)
    got1 = contrastive_head_loss(pos1, neg1, 0.1, row_tile=8, k_tile=128)["loss"]
    want1 = _reference_loss(pos1, neg1, 0.1)

    # 2) f32: ragged N rows + ragged K tail + multiple 128-lane groups per tile.
    pos2 = jax.random.normal(kp2, (20, 1), jnp.float32)
    neg2 = jax.random.normal(kn2, (20, 456), jnp.float32)
    got2 = contrastive_head_loss(pos2, neg2, 0.07, row_tile=16, k_tile=256)["loss"]
    want2 = _reference_loss(pos2, neg2, 0.07)

    # 3) default tile config: exercises the ">= 2 row tiles" (v7x megacore) split path.
    got3 = contrastive_head_loss(pos1, neg1, 0.1)["loss"]
    want3 = want1

    # 4) bf16 streaming (16-row sublane tiling), ragged N and ragged K.
    pos4 = jax.random.normal(kp4, (24, 1), jnp.float32).astype(jnp.bfloat16)
    neg4 = jax.random.normal(kn4, (24, 300), jnp.float32).astype(jnp.bfloat16)
    got4 = contrastive_head_loss(pos4, neg4, 0.2, row_tile=16, k_tile=128)["loss"]
    want4 = _reference_loss(pos4, neg4, 0.2)

    for got, want in ((got1, want1), (got2, want2), (got3, want3), (got4, want4)):
        got = jax.block_until_ready(got)
        want = jax.block_until_ready(want)
        assert jnp.allclose(got, want, rtol=1e-5, atol=1e-4), (got, want)

    print("KERNEL_OK")
</pallas_src>

<mosaic_0001>
module attributes {stable_mosaic.version = 11 : i64} {
  func.func @_contrastive_head_kernel(%arg0: i32, %arg1: i32, %arg2: memref<1xf32, #tpu.memory_space<smem>>, %arg3: memref<8x1xf32, #tpu.memory_space<vmem>>, %arg4: memref<8x128xf32, #tpu.memory_space<vmem>>, %arg5: memref<8x1xf32, #tpu.memory_space<vmem>>, %arg6: memref<8x128xf32, #tpu.memory_space<vmem>>, %arg7: memref<8x128xf32, #tpu.memory_space<vmem>>) attributes {dimension_semantics = [#tpu.dimension_semantics<parallel>, #tpu.dimension_semantics<arbitrary>], iteration_bounds = array<i64: 3, 2>, scalar_prefetch = 0 : i64, scratch_operands = 2 : i64, tpu.core_type = #tpu.core_type<tc>, window_params = [{transform_indices = @transform_0, window_bounds = array<i64: 1>}, {transform_indices = @transform_1, window_bounds = array<i64: 8, 1>}, {transform_indices = @transform_2, window_bounds = array<i64: 8, 128>}, {transform_indices = @transform_3, window_bounds = array<i64: 8, 1>}]} {
    %c0 = arith.constant 0 : index
    %0 = memref.load %arg2[%c0] : memref<1xf32, #tpu.memory_space<smem>>
    %c0_i32 = arith.constant 0 : i32
    %1 = arith.cmpi eq, %arg1, %c0_i32 : i32
    %2 = arith.extui %1 : i1 to i32
    %c0_i32_0 = arith.constant 0 : i32
    %3 = arith.cmpi ne, %2, %c0_i32_0 : i32
    scf.if %3 {
      %cst_12 = arith.constant -1.000000e+30 : f32
      %29 = vector.broadcast %cst_12 : f32 to vector<8x128xf32>
      %c0_13 = arith.constant 0 : index
      %c0_14 = arith.constant 0 : index
      %30 = vector.load %arg6[%c0_13, %c0_14] : memref<8x128xf32, #tpu.memory_space<vmem>>, vector<8x128xf32>
      tpu.vector_store %arg6[%c0_13, %c0_14], %29 {strides = array<i32>} : memref<8x128xf32, #tpu.memory_space<vmem>>, vector<8x128xf32>,
      %cst_15 = arith.constant 0.000000e+00 : f32
      %31 = vector.broadcast %cst_15 : f32 to vector<8x128xf32>
      %c0_16 = arith.constant 0 : index
      %c0_17 = arith.constant 0 : index
      %32 = vector.load %arg7[%c0_16, %c0_17] : memref<8x128xf32, #tpu.memory_space<vmem>>, vector<8x128xf32>
      tpu.vector_store %arg7[%c0_16, %c0_17], %31 {strides = array<i32>} : memref<8x128xf32, #tpu.memory_space<vmem>>, vector<8x128xf32>,
    } else {
    }
    %c0_1 = arith.constant 0 : index
    %c0_2 = arith.constant 0 : index
    %4 = vector.load %arg4[%c0_1, %c0_2] : memref<8x128xf32, #tpu.memory_space<vmem>>, vector<8x128xf32>
    %5 = vector.broadcast %0 : f32 to vector<8x128xf32>
    %6 = arith.mulf %4, %5 : vector<8x128xf32>
    %7 = tpu.iota {dimensions = array<i32: 1>} : vector<8x128xi32>
    %c128_i32 = arith.constant 128 : i32
    %8 = arith.muli %arg1, %c128_i32 : i32
    %9 = vector.broadcast %8 : i32 to vector<8x128xi32>
    %10 = arith.addi %7, %9 : vector<8x128xi32>
    %c200_i32 = arith.constant 200 : i32
    %11 = vector.broadcast %c200_i32 : i32 to vector<8x128xi32>
    %12 = arith.cmpi slt, %10, %11 : vector<8x128xi32>
    %cst = arith.constant -1.000000e+30 : f32
    %13 = vector.broadcast %cst : f32 to vector<8x128xf32>
    %14 = arith.select %12, %6, %13 : vector<8x128xi1>, vector<8x128xf32>
    %c0_3 = arith.constant 0 : index
    %c0_4 = arith.constant 0 : index
    %15 = vector.load %arg6[%c0_3, %c0_4] : memref<8x128xf32, #tpu.memory_space<vmem>>, vector<8x128xf32>
    %16 = arith.maximumf %15, %14 : vector<8x128xf32>
    %c0_5 = arith.constant 0 : index
    %c0_6 = arith.constant 0 : index
    %17 = vector.load %arg7[%c0_5, %c0_6] : memref<8x128xf32, #tpu.memory_space<vmem>>, vector<8x128xf32>
    %18 = arith.subf %15, %16 : vector<8x128xf32>
    %19 = math.exp %18 : vector<8x128xf32>
    %20 = arith.mulf %17, %19 : vector<8x128xf32>
    %21 = arith.subf %14, %16 : vector<8x128xf32>
    %22 = math.exp %21 : vector<8x128xf32>
    %23 = arith.addf %20, %22 : vector<8x128xf32>
    %c0_7 = arith.constant 0 : index
    %c0_8 = arith.constant 0 : index
    %24 = vector.load %arg6[%c0_7, %c0_8] : memref<8x128xf32, #tpu.memory_space<vmem>>, vector<8x128xf32>
    tpu.vector_store %arg6[%c0_7, %c0_8], %16 {strides = array<i32>} : memref<8x128xf32, #tpu.memory_space<vmem>>, vector<8x128xf32>,
    %c0_9 = arith.constant 0 : index
    %c0_10 = arith.constant 0 : index
    %25 = vector.load %arg7[%c0_9, %c0_10] : memref<8x128xf32, #tpu.memory_space<vmem>>, vector<8x128xf32>
    tpu.vector_store %arg7[%c0_9, %c0_10], %23 {strides = array<i32>} : memref<8x128xf32, #tpu.memory_space<vmem>>, vector<8x128xf32>,
    %c1_i32 = arith.constant 1 : i32
    %26 = arith.cmpi eq, %arg1, %c1_i32 : i32
    %27 = arith.extui %26 : i1 to i32
    %c0_i32_11 = arith.constant 0 : i32
    %28 = arith.cmpi ne, %27, %c0_i32_11 : i32
    scf.if %28 {
      %c0_12 = arith.constant 0 : index
      %c0_13 = arith.constant 0 : index
      %29 = vector.load %arg3[%c0_12, %c0_13] : memref<8x1xf32, #tpu.memory_space<vmem>>, vector<8x1xf32>
      %30 = vector.broadcast %0 : f32 to vector<8x1xf32>
      %31 = arith.mulf %29, %30 : vector<8x1xf32>
      %c0_14 = arith.constant 0 : index
      %c0_15 = arith.constant 0 : index
      %32 = vector.load %arg6[%c0_14, %c0_15] : memref<8x128xf32, #tpu.memory_space<vmem>>, vector<8x128xf32>
      %c0_16 = arith.constant 0 : index
      %c0_17 = arith.constant 0 : index
      %33 = vector.load %arg7[%c0_16, %c0_17] : memref<8x128xf32, #tpu.memory_space<vmem>>, vector<8x128xf32>
      %cst_18 = arith.constant dense<0xFF800000> : vector<8xf32>
      %34 = vector.multi_reduction <maximumf>, %32, %cst_18 [1] : vector<8x128xf32> to vector<8xf32>
      %35 = vector.shape_cast %34 : vector<8xf32> to vector<8x1xf32>
      %36 = vector.broadcast %35 : vector<8x1xf32> to vector<8x128xf32>
      %37 = arith.subf %32, %36 : vector<8x128xf32>
      %38 = math.exp %37 : vector<8x128xf32>
      %39 = arith.mulf %33, %38 : vector<8x128xf32>
      %cst_19 = arith.constant dense<0.000000e+00> : vector<8xf32>
      %40 = vector.multi_reduction <add>, %39, %cst_19 [1] : vector<8x128xf32> to vector<8xf32>
      %41 = vector.shape_cast %40 : vector<8xf32> to vector<8x1xf32>
      %42 = arith.maximumf %35, %31 : vector<8x1xf32>
      %43 = arith.subf %35, %42 : vector<8x1xf32>
      %44 = math.exp %43 : vector<8x1xf32>
      %45 = arith.mulf %41, %44 : vector<8x1xf32>
      %46 = arith.subf %31, %42 : vector<8x1xf32>
      %47 = math.exp %46 : vector<8x1xf32>
      %48 = arith.addf %45, %47 : vector<8x1xf32>
      %49 = math.log %48 : vector<8x1xf32>
      %50 = arith.addf %42, %49 : vector<8x1xf32>
      %51 = arith.subf %50, %31 : vector<8x1xf32>
      %c0_20 = arith.constant 0 : index
      %c0_21 = arith.constant 0 : index
      %52 = vector.load %arg5[%c0_20, %c0_21] : memref<8x1xf32, #tpu.memory_space<vmem>>, vector<8x1xf32>
      tpu.vector_store %arg5[%c0_20, %c0_21], %51 {strides = array<i32>} : memref<8x1xf32, #tpu.memory_space<vmem>>, vector<8x1xf32>,
    } else {
    }
    return
  }
  func.func @transform_0(%arg0: i32, %arg1: i32) -> i32 {
    %c0_i32 = arith.constant 0 : i32
    %c0_i32_0 = arith.constant 0 : i32
    return %c0_i32 : i32
  }
  func.func @transform_1(%arg0: i32, %arg1: i32) -> (i32, i32) {
    %c0_i32 = arith.constant 0 : i32
    %c0_i32_0 = arith.constant 0 : i32
    return %arg0, %c0_i32 : i32, i32
  }
  func.func @transform_2(%arg0: i32, %arg1: i32) -> (i32, i32) {
    %c0_i32 = arith.constant 0 : i32
    return %arg0, %arg1 : i32, i32
  }
  func.func @transform_3(%arg0: i32, %arg1: i32) -> (i32, i32) {
    %c0_i32 = arith.constant 0 : i32
    %c0_i32_0 = arith.constant 0 : i32
    return %arg0, %c0_i32 : i32, i32
  }
}

</mosaic_0001>

<llo_original>
// kernel: contrastive_head_loss.1
$region0: #{contrastive_head_loss.1}
  #allocation0 [shape = 'u32[]', space=smem, size = 0x4, offset = 0x4, fixed_abs, tag = 'smem constant byte address 0x4 - core index']
  #allocation1 [shape = 'u32[144,128]{1,0:T(1,128)}', space=vmem, size = 0x12000, scoped, tag = 'internal scratch']
  #allocation2 [shape = 'f32[8,128]{1,0:T(8,128)}', space=vmem, size = 0x1000, scoped, tag = 'scratch operand']
  #allocation3 [shape = 'f32[8,128]{1,0:T(8,128)}', space=vmem, size = 0x1000, scoped, tag = 'scratch operand']
  #allocation4 [shape = 'f32[1]{0:T(128)S(6)}', space=smem, size = 0x200, scoped, tag = 'scoped memory for contrastive_head_loss.1']
  %s0 = inlined_call_operand.<no memory space> [shape: f32[1], index: 0, kind: input, shape index: {}]
  %s1 = inlined_call_operand.vmem [shape: f32[24,1], index: 1, kind: input, shape index: {}]
  %s2 = inlined_call_operand.hbm [shape: f32[24,200], index: 2, kind: input, shape index: {}]
  %s3 = inlined_call_operand.vmem [shape: f32[24,1], index: 3, kind: output, shape index: {}]
  %s4 = sld [smem:[#allocation0]]
  $region57: #{contrastive_head_loss.1} parent=0
    _
  %s6 = ssub.s32 1, %s4
  %s7 = scalar_select 0, %s6, %s4
  %8 = sst [smem:[#allocation4]] %s0
  $region1: #{contrastive_head_loss.1} parent=0
    #allocation5 [shape = 'u8[8192]{0}', space=vmem, size = 0x2000, scoped, tag = 'input window, operand 2']
    #allocation6 [shape = 's32[2]{0}', space=sflag, size = 0x8, scoped, tag = 'scoped memory for contrastive_head_loss.1']
    %9 = vsyncpa [#allocation6], 0
    %s10 = scalar_lea.sflag [#allocation6], 1
    %11 = vsyncpa %s10, 0
    loop: start=0, step=1, limit=8
    $region2: #{contrastive_head_loss.1} parent=1 // loop_pre_header
      _
    $region3: #{contrastive_head_loss.1} parent=1 // loop_header
      %s13 = sphi 0, %s17
      %p14 = scmp.ge.s32.totalorder %s13, 8
      %s20 = sphi 0, %s32
      %s21 = sphi 0, %s28
      %s22 = sphi 0, %s20
      %s23 = sphi 0, %s21
      %s24 = sphi 0, %s22
      %s25 = sphi 0, %s23
      %s33 = sphi 0, %s33
      %s35 = sphi 0, %s33
      %s36 = sphi 0, %s35
      %s50 = sphi 0, %s36
      %s56 = sphi 0, %s58
      %s59 = sphi 0, %s56
      %s60 = sphi 0, %s59
      %s76 = sphi 0, %s60
      %s84 = sphi 0, %s86
      %s87 = sphi 0, %s84
      %s88 = sphi 0, %s87
      %s104 = sphi 0, %s88
      %s110 = sphi 0, %s112
      %s113 = sphi 0, %s110
      %s114 = sphi 0, %s113
      %s130 = sphi 0, %s114
    $region4: #{contrastive_head_loss.1} parent=1 // loop_header_branch
      %16 = sbr.rel (%p14) target = $region8
    $region5: #{contrastive_head_loss.1} parent=1 // loop_body
      %s18 = ssub.s32 %s13, 1
      %s19 = ssub.s32 %s13, 2
      %s26 = sadd.s32 1, %s21
      %p27 = scmp.ge.s32.totalorder %s26, 2
      %s28 = scalar_select %p27, 0, %s26
      %s29 = sadd.s32 1, %s20
      %s30 = scalar_select %p27, %s29, %s20
      %p31 = scmp.ge.s32.totalorder %s30, 3
      %s32 = scalar_select %p31, 0, %s30
      %s34 = sadd.s32 %s33, 1
      %p37 = scmp.eq.s32.totalorder %s13, 5
      %p38 = scmp.ne.s32.totalorder %s33, %s35
      %p39 = scmp.eq.s32.totalorder %s13, 0
      %p40 = por %p38, %p39
      %p41 = scmp.ne.s32.totalorder %s33, %s35
      %p42 = scmp.eq.s32.totalorder %s18, 5
      %p43 = por %p41, %p42
      %p44 = scmp.ne.s32.totalorder %s35, %s36
      %p45 = scmp.eq.s32.totalorder %s18, 0
      %p46 = por %p44, %p45
      %p47 = scmp.ne.s32.totalorder %s35, %s36
      %p48 = scmp.eq.s32.totalorder %s19, 5
      %p49 = por %p47, %p48
      %p51 = scmp.ne.s32.totalorder %s36, %s50
      %p52 = scmp.eq.s32.totalorder %s19, 0
      %p53 = por %p51, %p52
      %s54 = ssub.s32 %s20, %s32
      %p55 = scmp.eq.s32.totalorder %s54, 0
      %s57 = sadd.s32 %s56, 1
      %s58 = scalar_select %p55, %s56, %s57
      %p61 = pneg %p55
      %p62 = scmp.eq.s32.totalorder %s13, 5
      %p63 = por %p61, %p62
      %p64 = scmp.ne.s32.totalorder %s56, %s59
      %p65 = scmp.eq.s32.totalorder %s13, 0
      %p66 = por %p64, %p65
      %p67 = scmp.ne.s32.totalorder %s56, %s59
      %p68 = scmp.eq.s32.totalorder %s18, 5
      %p69 = por %p67, %p68
      %p70 = scmp.ne.s32.totalorder %s59, %s60
      %p71 = scmp.eq.s32.totalorder %s18, 0
      %p72 = por %p70, %p71
      %p73 = scmp.ne.s32.totalorder %s59, %s60
      %p74 = scmp.eq.s32.totalorder %s19, 5
      %p75 = por %p73, %p74
      %p77 = scmp.ne.s32.totalorder %s60, %s76
      %p78 = scmp.eq.s32.totalorder %s19, 0
      %p79 = por %p77, %p78
      %s80 = ssub.s32 %s20, %s32
      %s81 = ssub.s32 %s21, %s28
      %s82 = sor.u32 %s80, %s81
      %p83 = scmp.eq.s32.totalorder %s82, 0
      %s85 = sadd.s32 %s84, 1
      %s86 = scalar_select %p83, %s84, %s85
      %p89 = pneg %p83
      %p90 = scmp.eq.s32.totalorder %s13, 5
      %p91 = por %p89, %p90
      %p92 = scmp.ne.s32.totalorder %s84, %s87
      %p93 = scmp.eq.s32.totalorder %s13, 0
      %p94 = por %p92, %p93
      %p95 = scmp.ne.s32.totalorder %s84, %s87
      %p96 = scmp.eq.s32.totalorder %s18, 5
      %p97 = por %p95, %p96
      %p98 = scmp.ne.s32.totalorder %s87, %s88
      %p99 = scmp.eq.s32.totalorder %s18, 0
      %p100 = por %p98, %p99
      %p101 = scmp.ne.s32.totalorder %s87, %s88
      %p102 = scmp.eq.s32.totalorder %s19, 5
      %p103 = por %p101, %p102
      %p105 = scmp.ne.s32.totalorder %s88, %s104
      %p106 = scmp.eq.s32.totalorder %s19, 0
      %p107 = por %p105, %p106
      %s108 = ssub.s32 %s20, %s32
      %p109 = scmp.eq.s32.totalorder %s108, 0
      %s111 = sadd.s32 %s110, 1
      %s112 = scalar_select %p109, %s110, %s111
      %p115 = pneg %p109
      %p116 = scmp.eq.s32.totalorder %s13, 5
      %p117 = por %p115, %p116
      %p118 = scmp.ne.s32.totalorder %s110, %s113
      %p119 = scmp.eq.s32.totalorder %s13, 0
      %p120 = por %p118, %p119
      %p121 = scmp.ne.s32.totalorder %s110, %s113
      %p122 = scmp.eq.s32.totalorder %s18, 5
      %p123 = por %p121, %p122
      %p124 = scmp.ne.s32.totalorder %s113, %s114
      %p125 = scmp.eq.s32.totalorder %s18, 0
      %p126 = por %p124, %p125
      %p127 = scmp.ne.s32.totalorder %s113, %s114
      %p128 = scmp.eq.s32.totalorder %s19, 5
      %p129 = por %p127, %p128
      %p131 = scmp.ne.s32.totalorder %s114, %s130
      %p132 = scmp.eq.s32.totalorder %s19, 0
      %p133 = por %p131, %p132
      %p134 = scmp.le.s32.totalorder 1, %s13
      %p135 = scmp.lt.s32.totalorder %s13, 7
      %p136 = pnand %p134, %p135
      %p137 = pneg %p136
      // Predicated region
      $region9: #{contrastive_head_loss.1} parent=5 // pred_check
        _
      $region10: #{contrastive_head_loss.1} parent=5 // pred_check_branch
        %139 = sbr.rel (%p136) target = $region12
      $region11: #{contrastive_head_loss.1} parent=5 // pred_region
        %s140 = ssub.s32 %s13, 1
        // Predicated region
        $region13: #{contrastive_head_loss.1} parent=11 // pred_check
          %p141 = pneg %p46
        $region14: #{contrastive_head_loss.1} parent=11 // pred_check_branch
          %143 = sbr.rel (%p141) target = $region16
        $region15: #{contrastive_head_loss.1} parent=11 // pred_region
          _
        $region16: #{contrastive_head_loss.1} parent=11 // pred_fallthru
          _
      $region12: #{contrastive_head_loss.1} parent=5 // pred_fallthru
        _
      %p144 = scmp.lt.s32.totalorder %s13, 6
      // Predicated region
      $region17: #{contrastive_head_loss.1} parent=5 // pred_check
        %p145 = pneg %p144
      $region18: #{contrastive_head_loss.1} parent=5 // pred_check_branch
        %147 = sbr.rel (%p145) target = $region20
      $region19: #{contrastive_head_loss.1} parent=5 // pred_region
        // Predicated region
        $region21: #{contrastive_head_loss.1} parent=19 // pred_check
          %p148 = pneg %p66
        $region22: #{contrastive_head_loss.1} parent=19 // pred_check_branch
          %150 = sbr.rel (%p148) target = $region24
        $region23: #{contrastive_head_loss.1} parent=19 // pred_region
          %p151 = scmp.lt.s32.totalorder %s20, 2
          %s152 = scalar_select %p151, %s20, 2
          %s153 = smul.addr %s152, 8
          %s154 = scalar_lea.vmem %s1, %s153
        $region24: #{contrastive_head_loss.1} parent=19 // pred_fallthru
          _
        // Predicated region
        $region25: #{contrastive_head_loss.1} parent=19 // pred_check
          %p155 = pneg %p94
        $region26: #{contrastive_head_loss.1} parent=19 // pred_check_branch
          %157 = sbr.rel (%p155) target = $region28
        $region27: #{contrastive_head_loss.1} parent=19 // pred_region
          %s158 = sand.u32 %s84, 1
          %s159 = scalar_lea.sflag [#allocation6], %s158
          %s160 = sand.u32 %s84, 1
          %s161 = smul.addr %s160, 8
          %s162 = scalar_lea.vmem [#allocation5], %s161
          %s164 = ssub.s32 128, 128
          %165 = vsyncadd %s159, %s164
          %s166 = smul.addr %s20, 2
          %s167 = sadd.s32 %s21, %s166
          %s168 = smul.addr %s167, 128
          %s169 = scalar_lea.hbm %s2, %s168
          %s171 = sshll.u32 %s162, 4
          %s172 = int_to_ptr.vmem [resolvable:$true] %s171
          %174 = dma.hbm_to_vmem [thread:$0]  %s169, 128, %s172, %s159
        $region28: #{contrastive_head_loss.1} parent=19 // pred_fallthru
          _
      $region20: #{contrastive_head_loss.1} parent=5 // pred_fallthru
        _
      %p175 = scmp.le.s32.totalorder 1, %s13
      %p176 = scmp.lt.s32.totalorder %s13, 7
      %p177 = pnand %p175, %p176
      %p178 = pneg %p177
      // Predicated region
      $region29: #{contrastive_head_loss.1} parent=5 // pred_check
        _
      $region30: #{contrastive_head_loss.1} parent=5 // pred_check_branch
        %180 = sbr.rel (%p177) target = $region32
      $region31: #{contrastive_head_loss.1} parent=5 // pred_region
        %s181 = ssub.s32 %s13, 1
        %s182 = sand.u32 %s87, 1
        %s183 = scalar_lea.sflag [#allocation6], %s182
        %s184 = sand.u32 %s87, 1
        %s185 = smul.addr %s184, 8
        %s186 = scalar_lea.vmem [#allocation5], %s185
        // Predicated region
        $region33: #{contrastive_head_loss.1} parent=31 // pred_check
          %p187 = pneg %p100
        $region34: #{contrastive_head_loss.1} parent=31 // pred_check_branch
          %189 = sbr.rel (%p187) target = $region36
        $region35: #{contrastive_head_loss.1} parent=31 // pred_region
          %190 = dma.done %s183, 128
        $region36: #{contrastive_head_loss.1} parent=31 // pred_fallthru
          _
        %p191 = pneg %p46
        %p192 = pneg %p43
        %p193 = scmp.lt.s32.totalorder %s22, 2
        %s194 = scalar_select %p193, %s22, 2
        %s195 = smul.addr %s194, 8
        %s196 = scalar_lea.vmem %s1, %s195
        %p197 = pneg %p72
        %p198 = pneg %p69
        %s199 = sand.u32 %s87, 1
        %s200 = scalar_lea.sflag [#allocation6], %s199
        %s201 = sand.u32 %s87, 1
        %s202 = smul.addr %s201, 8
        %s203 = scalar_lea.vmem [#allocation5], %s202
        %p204 = pneg %p100
        %p205 = pneg %p97
        %p206 = pneg %p126
        %p207 = pneg %p123
        %p208 = scmp.lt.s32.totalorder %s22, 2
        %s209 = scalar_select %p208, %s22, 2
        %s210 = smul.addr %s209, 8
        %s211 = scalar_lea.vmem %s3, %s210
        %p212 = scmp.lt.s32.totalorder %s22, 2
        %s213 = scalar_select %p212, %s22, 2
        %s214 = smul.addr %s213, 8
        %s215 = scalar_lea.vmem %s1, %s214
        %p216 = scmp.lt.s32.totalorder %s22, 2
        %s217 = scalar_select %p216, %s22, 2
        %s218 = smul.addr %s217, 8
        %s219 = scalar_lea.vmem %s3, %s218
        %s220 = sld [smem:[#allocation4]]
        %p221 = scmp.eq.s32.totalorder %s23, 0
        // Predicated region
        $region37: #{contrastive_head_loss.1} parent=31 // pred_check
          %p222 = pneg %p221
        $region38: #{contrastive_head_loss.1} parent=31 // pred_check_branch
          %224 = sbr.rel (%p222) target = $region40
        $region39: #{contrastive_head_loss.1} parent=31 // pred_region
          %225 = vst [vmem:[#allocation2] sm:$0xff] -1e+30
          %226 = vst [vmem:[#allocation3] sm:$0xff] 0.0
        $region40: #{contrastive_head_loss.1} parent=31 // pred_fallthru
          _
        %v227 = vld [vmem:[%s186] sm:$0xff]
        %v228 = vstv %s220
        %v229 = vmul.f32 %v227, %v228
        %v230 = vlaneseq
        %v231 = vand.u32 %v230, 127
        %s232 = smul.u32 %s23, 128
        %v233 = vstv %s232
        %v234 = vadd.s32 %v231, %v233
        %vm235 = vcmp.lt.s32.totalorder %v234, 200
        %v236 = vsel %vm235, %v229, -1e+30
        %v237 = vld [vmem:[#allocation2] sm:$0xff]
        %v238 = vmax.f32 %v237, %v236
        %v239 = vld [vmem:[#allocation3] sm:$0xff]
        %v240 = vsub.f32 %v237, %v238
        %v241 = vmul.f32 %v240, 1.442695
        %v242 = vpow.pop %v241
        %v243 = vmul.f32 %v239, %v242
        %v244 = vsub.f32 %v236, %v238
        %v245 = vmul.f32 %v244, 1.442695
        %v246 = vpow.pop %v245
        %v247 = vadd.f32 %v243, %v246
        %248 = vst [vmem:[#allocation2] sm:$0xff] %v238
        %249 = vst [vmem:[#allocation3] sm:$0xff] %v247
        %p250 = scmp.eq.s32.totalorder %s23, 1
        // Predicated region
        $region41: #{contrastive_head_loss.1} parent=31 // pred_check
          %p251 = pneg %p250
        $region42: #{contrastive_head_loss.1} parent=31 // pred_check_branch
          %253 = sbr.rel (%p251) target = $region44
        $region43: #{contrastive_head_loss.1} parent=31 // pred_region
          %v254 = vld [vmem:[%s215] sm:$0xff]
          %v255 = vmul.f32 %v254, %v228
          %v256 = vld [vmem:[#allocation2] sm:$0xff]
          %v257 = vld [vmem:[#allocation3] sm:$0xff]
          %258 = vmax.xlane.f32.xlu0 %v256
          %v259 = vpop.xlane.xlu0 %258
          %v260 = vsub.f32 %v256, %v259
          %v261 = vmul.f32 %v260, 1.442695
          %v262 = vpow.pop %v261
          %v263 = vmul.f32 %v257, %v262
          %264 = vadd.xlane.f32.xlu0 %v263
          %v265 = vpop.xlane.xlu0 %264
          %v266 = vmax.f32 %v259, %v255
          %v267 = vsub.f32 %v259, %v266
          %v268 = vmul.f32 %v267, 1.442695
          %v269 = vpow.pop %v268
          %v270 = vmul.f32 %v265, %v269
          %v271 = vsub.f32 %v255, %v266
          %v272 = vmul.f32 %v271, 1.442695
          %v273 = vpow.pop %v272
          %v274 = vadd.f32 %v270, %v273
          %v275 = vlog2.pop %v274
          %v276 = vmul.f32 %v275, 0.6931472
          %v277 = vadd.f32 %v266, %v276
          %v278 = vsub.f32 %v277, %v255
          %vm279 = vcmask 7168
          %280 = vst.msk [vmem:[%s219] sm:$0xff] %vm279, %v278
        $region44: #{contrastive_head_loss.1} parent=31 // pred_fallthru
          _
        %p281 = scmp.lt.s32.totalorder %s22, 2
        %s282 = scalar_select %p281, %s22, 2
        %s283 = smul.addr %s282, 8
        %s284 = scalar_lea.vmem %s3, %s283
        // Predicated region
        $region45: #{contrastive_head_loss.1} parent=31 // pred_check
          %p285 = pneg %p123
        $region46: #{contrastive_head_loss.1} parent=31 // pred_check_branch
          %287 = sbr.rel (%p285) target = $region48
        $region47: #{contrastive_head_loss.1} parent=31 // pred_region
          _
        $region48: #{contrastive_head_loss.1} parent=31 // pred_fallthru
          _
      $region32: #{contrastive_head_loss.1} parent=5 // pred_fallthru
        _
      %p288 = scmp.le.s32.totalorder 2, %s13
      // Predicated region
      $region49: #{contrastive_head_loss.1} parent=5 // pred_check
        %p289 = pneg %p288
      $region50: #{contrastive_head_loss.1} parent=5 // pred_check_branch
        %291 = sbr.rel (%p289) target = $region52
      $region51: #{contrastive_head_loss.1} parent=5 // pred_region
        %s292 = ssub.s32 %s13, 2
        // Predicated region
        $region53: #{contrastive_head_loss.1} parent=51 // pred_check
          %p293 = pneg %p129
        $region54: #{contrastive_head_loss.1} parent=51 // pred_check_branch
          %295 = sbr.rel (%p293) target = $region56
        $region55: #{contrastive_head_loss.1} parent=51 // pred_region
          %p296 = scmp.lt.s32.totalorder %s24, 2
          %s297 = scalar_select %p296, %s24, 2
          %s298 = smul.addr %s297, 8
          %s299 = scalar_lea.vmem %s3, %s298
        $region56: #{contrastive_head_loss.1} parent=51 // pred_fallthru
          _
      $region52: #{contrastive_head_loss.1} parent=5 // pred_fallthru
        _
    $region6: #{contrastive_head_loss.1} parent=1 // loop_footer
      %s17 = sadd.s32 1, %s13
    $region7: #{contrastive_head_loss.1} parent=1 // loop_footer_branch
      %12 = sbr.rel target = $region3
    $region8: #{contrastive_head_loss.1} parent=1 // loop_exit
      _
    %300 = vsyncpa [#allocation6], 1
    %s301 = scalar_lea.sflag [#allocation6], 1
    %302 = vsyncpa %s301, 1

</llo_original>
